<compile_context>
chip_gen: v7x
topology: tpu7x:2x2x1
jax: 0.10.0
libtpu: 0.0.40
codegen_flags: <defaults>
</compile_context>

<pallas_src>
import math
from functools import partial

import jax
import jax.numpy as jnp
from jax import lax
from jax.experimental import pallas as pl
from jax.experimental.pallas import tpu as pltpu


# ---------------------------------------------------------------------------
# Kernel 1: fused matmul + bias (+ optional ReLU) — used for every linear layer
# ---------------------------------------------------------------------------
def _linear_kernel(x_ref, w_ref, b_ref, o_ref, *, activation):
    acc = jnp.dot(x_ref[...], w_ref[...], preferred_element_type=jnp.float32)
    acc = acc + b_ref[...].astype(jnp.float32)
    if activation == "relu":
        acc = jnp.maximum(acc, 0.0)
    o_ref[...] = acc.astype(o_ref.dtype)


def _pick_tile(m):
    # biggest row tile (multiple of 128 when possible) that evenly divides M
    for t in (512, 256, 128):
        if m % t == 0:
            return t
    return m


def linear(x2d, w, b, *, activation=None):
    """y = x2d @ w + b (optional ReLU).  x2d: (M, K), w: (K, N), b: (N,)."""
    M, K = x2d.shape
    K2, N = w.shape
    assert K == K2, f"contraction mismatch {K} vs {K2}"
    tm = _pick_tile(M)
    b2 = b.reshape(1, N)
    return pl.pallas_call(
        partial(_linear_kernel, activation=activation),
        out_shape=jax.ShapeDtypeStruct((M, N), x2d.dtype),
        grid_spec=pltpu.PrefetchScalarGridSpec(
            num_scalar_prefetch=0,
            grid=(M // tm,),
            in_specs=[
                pl.BlockSpec((tm, K), lambda i: (i, 0)),
                pl.BlockSpec((K, N), lambda i: (0, 0)),   # resident across steps
                pl.BlockSpec((1, N), lambda i: (0, 0)),
            ],
            out_specs=pl.BlockSpec((tm, N), lambda i: (i, 0)),
        ),
        compiler_params=pltpu.CompilerParams(
            dimension_semantics=("parallel",),
        ),
        cost_estimate=pl.CostEstimate(
            flops=2 * M * K * N,
            transcendentals=0,
            bytes_accessed=4 * (M * K + K * N + N + M * N),
        ),
    )(x2d, w, b2)


# ---------------------------------------------------------------------------
# Kernel 2: causal multi-head attention — one grid step per batch element,
#           all heads processed together (batched MXU matmuls).
# ---------------------------------------------------------------------------
def _attention_kernel(q_ref, k_ref, v_ref, o_ref, *, scale, causal):
    q = q_ref[...].astype(jnp.float32)   # (H, L, E)
    k = k_ref[...].astype(jnp.float32)   # (H, S, E)
    v = v_ref[...].astype(jnp.float32)   # (H, S, E)

    s = jnp.einsum("hle,hse->hls", q, k, preferred_element_type=jnp.float32)
    s = s * scale
    if causal:
        L, S = s.shape[1], s.shape[2]
        row = lax.broadcasted_iota(jnp.int32, (L, S), 0)
        col = lax.broadcasted_iota(jnp.int32, (L, S), 1)
        s = jnp.where((col > row)[None, :, :], jnp.float32(-1e30), s)

    m = jnp.max(s, axis=-1, keepdims=True)
    p = jnp.exp(s - m)
    denom = jnp.sum(p, axis=-1, keepdims=True)
    a = p / denom
    o = jnp.einsum("hls,hse->hle", a, v, preferred_element_type=jnp.float32)
    o_ref[...] = o.astype(o_ref.dtype)


def causal_attention(q, k, v, *, scale):
    """q, k, v: (B, H, L, E) -> (B, H, L, E) with causal masking + softmax."""
    B, H, L, E = q.shape
    spec = pl.BlockSpec((None, H, L, E), lambda b: (b, 0, 0, 0))
    return pl.pallas_call(
        partial(_attention_kernel, scale=scale, causal=True),
        out_shape=jax.ShapeDtypeStruct((B, H, L, E), q.dtype),
        grid_spec=pltpu.PrefetchScalarGridSpec(
            num_scalar_prefetch=0,
            grid=(B,),
            in_specs=[spec, spec, spec],
            out_specs=pl.BlockSpec((None, H, L, E), lambda b: (b, 0, 0, 0)),
        ),
        compiler_params=pltpu.CompilerParams(
            dimension_semantics=("parallel",),
        ),
        cost_estimate=pl.CostEstimate(
            flops=4 * B * H * L * L * E,
            transcendentals=B * H * L * L,
            bytes_accessed=4 * 4 * B * H * L * E,
        ),
    )(q, k, v)


# ---------------------------------------------------------------------------
# Kernel 3: fused residual-add + LayerNorm
# ---------------------------------------------------------------------------
def _add_layernorm_kernel(x_ref, y_ref, g_ref, b_ref, o_ref, *, eps):
    s = x_ref[...].astype(jnp.float32) + y_ref[...].astype(jnp.float32)   # (TM, D)
    mean = jnp.mean(s, axis=-1, keepdims=True)
    c = s - mean
    var = jnp.mean(c * c, axis=-1, keepdims=True)
    inv = lax.rsqrt(var + eps)
    out = c * inv * g_ref[...].astype(jnp.float32) + b_ref[...].astype(jnp.float32)
    o_ref[...] = out.astype(o_ref.dtype)


def add_layernorm(x2d, y2d, gamma, beta, *, eps=1e-5):
    """LayerNorm(x2d + y2d) over the last dim.  x2d, y2d: (M, D)."""
    M, D = x2d.shape
    tm = _pick_tile(M)
    return pl.pallas_call(
        partial(_add_layernorm_kernel, eps=eps),
        out_shape=jax.ShapeDtypeStruct((M, D), x2d.dtype),
        grid_spec=pltpu.PrefetchScalarGridSpec(
            num_scalar_prefetch=0,
            grid=(M // tm,),
            in_specs=[
                pl.BlockSpec((tm, D), lambda i: (i, 0)),
                pl.BlockSpec((tm, D), lambda i: (i, 0)),
                pl.BlockSpec((1, D), lambda i: (0, 0)),
                pl.BlockSpec((1, D), lambda i: (0, 0)),
            ],
            out_specs=pl.BlockSpec((tm, D), lambda i: (i, 0)),
        ),
        compiler_params=pltpu.CompilerParams(
            dimension_semantics=("parallel",),
        ),
    )(x2d, y2d, gamma.reshape(1, D), beta.reshape(1, D))


# ---------------------------------------------------------------------------
# Full Attention_Block forward (inference semantics; dropout = identity)
# ---------------------------------------------------------------------------
def attention_block_forward(x, p):
    B, L, D = x.shape
    H = p["n_heads"]
    E = D // H
    scale = 1.0 / math.sqrt(E)

    x2 = x.reshape(B * L, D)

    # q/k/v projections (fused matmul+bias kernels)
    q = linear(x2, p["wq"], p["bq"]).reshape(B, L, H, E).transpose(0, 2, 1, 3)
    k = linear(x2, p["wk"], p["bk"]).reshape(B, L, H, E).transpose(0, 2, 1, 3)
    v = linear(x2, p["wv"], p["bv"]).reshape(B, L, H, E).transpose(0, 2, 1, 3)

    # causal multi-head attention
    attn = causal_attention(q, k, v, scale=scale)                     # (B, H, L, E)
    attn2 = attn.transpose(0, 2, 1, 3).reshape(B * L, D)

    # output projection + residual + norm1
    o = linear(attn2, p["wo"], p["bo"])
    x1 = add_layernorm(x2, o, p["g1"], p["be1"])

    # FFN: conv1(1x1) + ReLU, conv2(1x1), residual + norm2
    h = linear(x1, p["w1"], p["b1"], activation="relu")
    y = linear(h, p["w2"], p["b2"])
    out = add_layernorm(x1, y, p["g2"], p["be2"])
    return out.reshape(B, L, D)


# ---------------------------------------------------------------------------
# Parameter init + pure-JAX reference (for correctness check)
# ---------------------------------------------------------------------------
def init_params(key, d_model, d_ff, n_heads):
    ks = jax.random.split(key, 12)

    def w(k, i, o):
        return jax.random.normal(k, (i, o), jnp.float32) / math.sqrt(i)

    def bvec(k, o):
        return jax.random.normal(k, (o,), jnp.float32) * 0.01

    return dict(
        n_heads=n_heads,
        wq=w(ks[0], d_model, d_model), bq=bvec(ks[1], d_model),
        wk=w(ks[2], d_model, d_model), bk=bvec(ks[3], d_model),
        wv=w(ks[4], d_model, d_model), bv=bvec(ks[5], d_model),
        wo=w(ks[6], d_model, d_model), bo=bvec(ks[7], d_model),
        w1=w(ks[8], d_model, d_ff),    b1=bvec(ks[9], d_ff),
        w2=w(ks[10], d_ff, d_model),   b2=bvec(ks[11], d_model),
        g1=jnp.ones((d_model,), jnp.float32), be1=jnp.zeros((d_model,), jnp.float32),
        g2=jnp.ones((d_model,), jnp.float32), be2=jnp.zeros((d_model,), jnp.float32),
    )


def reference_forward(x, p):
    B, L, D = x.shape
    H = p["n_heads"]
    E = D // H
    hp = jax.lax.Precision.HIGHEST
    x2 = x.reshape(B * L, D)

    def lin(z, w, b):
        return jnp.dot(z, w, precision=hp) + b

    def ln(z, g, b, eps=1e-5):
        mu = jnp.mean(z, axis=-1, keepdims=True)
        c = z - mu
        var = jnp.mean(c * c, axis=-1, keepdims=True)
        return c / jnp.sqrt(var + eps) * g + b

    q = lin(x2, p["wq"], p["bq"]).reshape(B, L, H, E)
    k = lin(x2, p["wk"], p["bk"]).reshape(B, L, H, E)
    v = lin(x2, p["wv"], p["bv"]).reshape(B, L, H, E)

    scale = 1.0 / math.sqrt(E)
    scores = jnp.einsum("blhe,bshe->bhls", q, k, precision=hp)
    mask = jnp.triu(jnp.ones((L, L), dtype=bool), k=1)
    scores = jnp.where(mask[None, None], -jnp.inf, scores)
    a = jax.nn.softmax(scale * scores, axis=-1)
    out = jnp.einsum("bhls,bshd->blhd", a, v, precision=hp).reshape(B * L, D)

    o = lin(out, p["wo"], p["bo"])
    x1 = ln(x2 + o, p["g1"], p["be1"])
    h = jax.nn.relu(lin(x1, p["w1"], p["b1"]))
    y = lin(h, p["w2"], p["b2"])
    return ln(x1 + y, p["g2"], p["be2"]).reshape(B, L, D)


if __name__ == "__main__":
    B, L, d_model, n_heads = 2, 16, 32, 8
    d_ff = 4 * d_model

    key = jax.random.PRNGKey(0)
    kx, kp = jax.random.split(key)
    x = jax.random.normal(kx, (B, L, d_model), dtype=jnp.float32)
    params = init_params(kp, d_model, d_ff, n_heads)

    out = attention_block_forward(x, params)
    out = jax.block_until_ready(out)
    assert out.shape == (B, L, d_model)

    ref = reference_forward(x, params)
    max_err = float(jnp.max(jnp.abs(out - ref)))
    assert jnp.allclose(out, ref, atol=2e-3, rtol=2e-3), f"mismatch vs reference, max_err={max_err}"

    print("KERNEL_OK")
</pallas_src>

<mosaic_0001>
module attributes {stable_mosaic.version = 11 : i64} {
  func.func @_linear_kernel(%arg0: i32, %arg1: memref<32x32xf32, #tpu.memory_space<vmem>>, %arg2: memref<32x32xf32, #tpu.memory_space<vmem>>, %arg3: memref<1x32xf32, #tpu.memory_space<vmem>>, %arg4: memref<32x32xf32, #tpu.memory_space<vmem>>) attributes {dimension_semantics = [#tpu.dimension_semantics<parallel>], iteration_bounds = array<i64: 1>, scalar_prefetch = 0 : i64, scratch_operands = 0 : i64, tpu.core_type = #tpu.core_type<tc>, window_params = [{transform_indices = @transform_0, window_bounds = array<i64: 32, 32>}, {pipeline_mode = #tpu.pipeline_mode<synchronous>, transform_indices = @transform_1, window_bounds = array<i64: 32, 32>}, {pipeline_mode = #tpu.pipeline_mode<synchronous>, transform_indices = @transform_2, window_bounds = array<i64: 1, 32>}, {transform_indices = @transform_3, window_bounds = array<i64: 32, 32>}]} {
    %c0 = arith.constant 0 : index
    %c0_0 = arith.constant 0 : index
    %0 = vector.load %arg1[%c0, %c0_0] : memref<32x32xf32, #tpu.memory_space<vmem>>, vector<32x32xf32>
    %c0_1 = arith.constant 0 : index
    %c0_2 = arith.constant 0 : index
    %1 = vector.load %arg2[%c0_1, %c0_2] : memref<32x32xf32, #tpu.memory_space<vmem>>, vector<32x32xf32>
    %cst = arith.constant dense<0.000000e+00> : vector<32x32xf32>
    %2 = tpu.matmul %0, %1, %cst {dimension_numbers = #tpu.dot_dimension_numbers<[1], [0], [0], [1], [0, 0, 1, 1], [], []>} : vector<32x32xf32>, vector<32x32xf32>, vector<32x32xf32> -> vector<32x32xf32>
    %c0_3 = arith.constant 0 : index
    %c0_4 = arith.constant 0 : index
    %3 = vector.load %arg3[%c0_3, %c0_4] : memref<1x32xf32, #tpu.memory_space<vmem>>, vector<1x32xf32>
    %4 = vector.broadcast %3 : vector<1x32xf32> to vector<32x32xf32>
    %5 = arith.addf %2, %4 : vector<32x32xf32>
    %c0_5 = arith.constant 0 : index
    %c0_6 = arith.constant 0 : index
    %6 = vector.load %arg4[%c0_5, %c0_6] : memref<32x32xf32, #tpu.memory_space<vmem>>, vector<32x32xf32>
    tpu.vector_store %arg4[%c0_5, %c0_6], %5 {strides = array<i32>} : memref<32x32xf32, #tpu.memory_space<vmem>>, vector<32x32xf32>,
    return
  }
  func.func @transform_0(%arg0: i32) -> (i32, i32) {
    %c0_i32 = arith.constant 0 : i32
    %c0_i32_0 = arith.constant 0 : i32
    return %arg0, %c0_i32 : i32, i32
  }
  func.func @transform_1(%arg0: i32) -> (i32, i32) {
    %c0_i32 = arith.constant 0 : i32
    %c0_i32_0 = arith.constant 0 : i32
    %c0_i32_1 = arith.constant 0 : i32
    return %c0_i32, %c0_i32_0 : i32, i32
  }
  func.func @transform_2(%arg0: i32) -> (i32, i32) {
    %c0_i32 = arith.constant 0 : i32
    %c0_i32_0 = arith.constant 0 : i32
    %c0_i32_1 = arith.constant 0 : i32
    return %c0_i32, %c0_i32_0 : i32, i32
  }
  func.func @transform_3(%arg0: i32) -> (i32, i32) {
    %c0_i32 = arith.constant 0 : i32
    %c0_i32_0 = arith.constant 0 : i32
    return %arg0, %c0_i32 : i32, i32
  }
}

</mosaic_0001>

<llo_original>
// kernel: tpu_custom_call.1
$region0: #{tpu_custom_call.1}
  #allocation0 [shape = 'u32[]', space=smem, size = 0x4, offset = 0x4, fixed_abs, tag = 'smem constant byte address 0x4 - core index']
  #allocation1 [shape = 'u32[144,128]{1,0:T(1,128)}', space=vmem, size = 0x12000, scoped, tag = 'internal scratch']
  %s0 = inlined_call_operand.hbm [shape: f32[32,32], index: 0, kind: input, shape index: {}]
  %s1 = inlined_call_operand.hbm [shape: f32[32,32], index: 1, kind: input, shape index: {}]
  %s2 = inlined_call_operand.vmem [shape: f32[1,32], index: 2, kind: input, shape index: {}]
  %s3 = inlined_call_operand.hbm [shape: f32[32,32], index: 3, kind: output, shape index: {}]
  %s4 = sld [smem:[#allocation0]]
  $region30: #{tpu_custom_call.1} parent=0
    _
  %s6 = ssub.s32 1, %s4
  %s7 = scalar_select 0, %s6, %s4
  $region1: #{tpu_custom_call.1} parent=0
    #allocation2 [shape = 'u8[16384]{0}', space=vmem, size = 0x4000, scoped, tag = 'input window, operand 0, single buffered']
    #allocation3 [shape = 's32[1]{0}', space=sflag, size = 0x4, scoped, tag = 'scoped memory for tpu_custom_call.1']
    #allocation4 [shape = 's32[1]{0}', space=sflag, size = 0x4, scoped, tag = 'scoped memory for tpu_custom_call.1']
    #allocation5 [shape = 'u8[16384]{0}', space=vmem, size = 0x4000, scoped, tag = 'input window, operand 1, single buffered']
    #allocation6 [shape = 's32[1]{0}', space=sflag, size = 0x4, scoped, tag = 'scoped memory for tpu_custom_call.1']
    #allocation7 [shape = 'u8[16384]{0}', space=vmem, size = 0x4000, scoped, tag = 'output window, operand 0, single buffered']
    %8 = vsyncpa [#allocation3], 0
    %9 = vsyncpa [#allocation6], 0
    %10 = vsyncpa [#allocation4], 0
    // Predicated region
    $region2: #{tpu_custom_call.1} parent=1 // pred_check
      _
    $region3: #{tpu_custom_call.1} parent=1 // pred_check_branch
      %12 = sbr.rel (0) target = $region5
    $region4: #{tpu_custom_call.1} parent=1 // pred_region
      %s14 = ssub.s32 512, 512
      %15 = vsyncadd [#allocation3], %s14
      %s16 = sshll.u32 [#allocation2], 4
      %s17 = int_to_ptr.vmem [resolvable:$true] %s16
      %22 = dma.hbm_to_vmem [thread:$0]  %s0, 512, %s17, [#allocation3], 128, 128, 8
    $region5: #{tpu_custom_call.1} parent=1 // pred_fallthru
      _
    // Predicated region
    $region6: #{tpu_custom_call.1} parent=1 // pred_check
      _
    $region7: #{tpu_custom_call.1} parent=1 // pred_check_branch
      %24 = sbr.rel (0) target = $region9
    $region8: #{tpu_custom_call.1} parent=1 // pred_region
      %s26 = ssub.s32 512, 512
      %27 = vsyncadd [#allocation6], %s26
      %s28 = sshll.u32 [#allocation5], 4
      %s29 = int_to_ptr.vmem [resolvable:$true] %s28
      %34 = dma.hbm_to_vmem [thread:$0]  %s1, 512, %s29, [#allocation6], 128, 128, 8
    $region9: #{tpu_custom_call.1} parent=1 // pred_fallthru
      _
    // Predicated region
    $region10: #{tpu_custom_call.1} parent=1 // pred_check
      _
    $region11: #{tpu_custom_call.1} parent=1 // pred_check_branch
      %36 = sbr.rel (0) target = $region13
    $region12: #{tpu_custom_call.1} parent=1 // pred_region
      _
    $region13: #{tpu_custom_call.1} parent=1 // pred_fallthru
      _
    // Predicated region
    $region14: #{tpu_custom_call.1} parent=1 // pred_check
      _
    $region15: #{tpu_custom_call.1} parent=1 // pred_check_branch
      %38 = sbr.rel (0) target = $region17
    $region16: #{tpu_custom_call.1} parent=1 // pred_region
      %39 = dma.done [#allocation3], 512
    $region17: #{tpu_custom_call.1} parent=1 // pred_fallthru
      _
    // Predicated region
    $region18: #{tpu_custom_call.1} parent=1 // pred_check
      _
    $region19: #{tpu_custom_call.1} parent=1 // pred_check_branch
      %41 = sbr.rel (0) target = $region21
    $region20: #{tpu_custom_call.1} parent=1 // pred_region
      %42 = dma.done [#allocation6], 512
    $region21: #{tpu_custom_call.1} parent=1 // pred_fallthru
      _
    %v43 = vld [vmem:[#allocation2] sm:$0xff]
    %v44 = vld [vmem:[#allocation2 + $0x8] sm:$0xff]
    %v45 = vld [vmem:[#allocation2 + $0x10] sm:$0xff]
    %v46 = vld [vmem:[#allocation2 + $0x18] sm:$0xff]
    %v47 = vld [vmem:[#allocation5] sm:$0xff]
    %v48 = vld [vmem:[#allocation5 + $0x8] sm:$0xff]
    %v49 = vld [vmem:[#allocation5 + $0x10] sm:$0xff]
    %v50 = vld [vmem:[#allocation5 + $0x18] sm:$0xff]
    %v51 = vld [vmem:[%s2] sm:$0x1]
    %v53 = vlaneseq
    %v54 = vshrl.u32 %v53, 7
    %v55 = vsub.s32 0, %v54
    %v56 = vrot.slane %v51, %v55
    %vm58 = vcmask 261120
    %v60 = vsel %vm58, %v43, 0
    %v63 = vsel %vm58, %v44, 0
    %v66 = vsel %vm58, %v45, 0
    %v69 = vsel %vm58, %v46, 0
    %71 = vmatprep.subr.mxu0 0.0
    %72 = vmatpush1.msra.mxu0 %v47
    %73 = vmatprep.subr.mxu0 0.0
    %74 = vmatpush1.msra.mxu0 %v48
    %75 = vmatprep.subr.mxu0 0.0
    %76 = vmatpush1.msra.mxu0 %v49
    %77 = vmatprep.subr.mxu0 0.0
    %78 = vmatpush1.msra.mxu0 %v50
    %79 = vmatprep.subr.mxu0 0.0
    %80 = vmatpush1.msra.mxu0 0.0
    %81 = vmatprep.subr.mxu0 0.0
    %82 = vmatpush1.msra.mxu0 0.0
    %83 = vmatprep.subr.mxu0 0.0
    %84 = vmatpush1.msra.mxu0 0.0
    %85 = vmatprep.subr.mxu0 0.0
    %86 = vmatpush1.msra.mxu0 0.0
    %87 = vmatprep.subr.mxu0 0.0
    %88 = vmatpush1.msra.mxu0 0.0
    %89 = vmatprep.subr.mxu0 0.0
    %90 = vmatpush1.msra.mxu0 0.0
    %91 = vmatprep.subr.mxu0 0.0
    %92 = vmatpush1.msra.mxu0 0.0
    %93 = vmatprep.subr.mxu0 0.0
    %94 = vmatpush1.msra.mxu0 0.0
    %95 = vmatprep.subr.mxu0 0.0
    %96 = vmatpush1.msra.mxu0 0.0
    %97 = vmatprep.subr.mxu0 0.0
    %98 = vmatpush1.msra.mxu0 0.0
    %99 = vmatprep.subr.mxu0 0.0
    %100 = vmatpush1.msra.mxu0 0.0
    %101 = vmatprep.subr.mxu0 0.0
    %102 = vmatpush1.msra.mxu0 0.0
    %103 = vmatprep.subr.mxu0 0.0
    %104 = vmatpush1.msra.mxu0 0.0
    %105 = vmatprep.subr.mxu0 0.0
    %106 = vmatpush1.msra.mxu0 0.0
    %107 = vmatprep.subr.mxu0 0.0
    %108 = vmatpush1.msra.mxu0 0.0
    %109 = vmatprep.subr.mxu0 0.0
    %110 = vmatpush1.msra.mxu0 0.0
    %111 = vmatprep.subr.mxu0 0.0
    %112 = vmatpush1.msra.mxu0 0.0
    %113 = vmatprep.subr.mxu0 0.0
    %114 = vmatpush1.msra.mxu0 0.0
    %115 = vmatprep.subr.mxu0 0.0
    %116 = vmatpush1.msra.mxu0 0.0
    %117 = vmatprep.subr.mxu0 0.0
    %118 = vmatpush1.msra.mxu0 0.0
    %119 = vmatprep.subr.mxu0 0.0
    %120 = vmatpush1.msra.mxu0 0.0
    %121 = vmatprep.subr.mxu0 0.0
    %122 = vmatpush1.msra.mxu0 0.0
    %123 = vmatprep.subr.mxu0 0.0
    %124 = vmatpush1.msra.mxu0 0.0
    %125 = vmatprep.subr.mxu0 0.0
    %126 = vmatpush1.msra.mxu0 0.0
    %127 = vmatprep.subr.mxu0 0.0
    %128 = vmatpush1.msra.mxu0 0.0
    %129 = vmatprep.subr.mxu0 0.0
    %130 = vmatpush1.msra.mxu0 0.0
    %131 = vmatprep.subr.mxu0 0.0
    %132 = vmatpush1.msra.mxu0 0.0
    %133 = vmatprep.subr.mxu0 0.0
    %134 = vmatpush1.msra.mxu0 0.0
    %135 = vmatprep.mubr.f32.mxu0 0.0
    %136 = vmatmul.mubr.f32.gmra.mrb[0].mxu0 %v60
    %v137 = vpop.f32.mrb[0].mxu0
    %v138 = vadd.f32 %v56, %v137
    %v139 = vpop.f32.mrb[0].mxu0
    %140 = vmatprep.mubr.f32.mxu0 0.0
    %141 = vmatmul.mubr.f32.gmra.mrb[0].mxu0 %v63
    %v142 = vpop.f32.mrb[0].mxu0
    %v143 = vadd.f32 %v56, %v142
    %v144 = vpop.f32.mrb[0].mxu0
    %145 = vmatprep.mubr.f32.mxu0 0.0
    %146 = vmatmul.mubr.f32.gmra.mrb[0].mxu0 %v66
    %v147 = vpop.f32.mrb[0].mxu0
    %v148 = vadd.f32 %v56, %v147
    %v149 = vpop.f32.mrb[0].mxu0
    %150 = vmatprep.mubr.f32.mxu0 0.0
    %151 = vmatmul.mubr.f32.gmra.mrb[0].mxu0 %v69
    %v152 = vpop.f32.mrb[0].mxu0
    %v153 = vadd.f32 %v56, %v152
    %v154 = vpop.f32.mrb[0].mxu0
    %155 = vdwg.mxu0
    %156 = vst.msk [vmem:[#allocation7] sm:$0xff] %vm58, %v138
    %157 = vst.msk [vmem:[#allocation7 + $0x8] sm:$0xff] %vm58, %v143
    %158 = vst.msk [vmem:[#allocation7 + $0x10] sm:$0xff] %vm58, %v148
    %159 = vst.msk [vmem:[#allocation7 + $0x18] sm:$0xff] %vm58, %v153
    // Predicated region
    $region22: #{tpu_custom_call.1} parent=1 // pred_check
      _
    $region23: #{tpu_custom_call.1} parent=1 // pred_check_branch
      %161 = sbr.rel (0) target = $region25
    $region24: #{tpu_custom_call.1} parent=1 // pred_region
      %s163 = ssub.s32 512, 512
      %164 = vsyncadd [#allocation4], %s163
      %s165 = sshll.u32 [#allocation7], 4
      %s166 = int_to_ptr.vmem [resolvable:$true] %s165
      %171 = dma.vmem_to_hbm [thread:$0]  %s166, 512, %s3, [#allocation4], 128, 128, 8
    $region25: #{tpu_custom_call.1} parent=1 // pred_fallthru
      _
    // Predicated region
    $region26: #{tpu_custom_call.1} parent=1 // pred_check
      _
    $region27: #{tpu_custom_call.1} parent=1 // pred_check_branch
      %173 = sbr.rel (0) target = $region29
    $region28: #{tpu_custom_call.1} parent=1 // pred_region
      %174 = dma.done [#allocation4], 512
    $region29: #{tpu_custom_call.1} parent=1 // pred_fallthru
      _
    %175 = vsyncpa [#allocation3], 1
    %176 = vsyncpa [#allocation6], 1
    %177 = vsyncpa [#allocation4], 1

</llo_original>
